<compile_context>
chip_gen: v5e
topology: v5e:2x2
jax: 0.10.0
libtpu: 0.0.40
codegen_flags: <defaults>
</compile_context>

<pallas_src>
import jax
import jax.numpy as jnp
import numpy as np
from jax.experimental import pallas as pl
from jax.experimental.pallas import tpu as pltpu


def _round_up(x, m):
    return (x + m - 1) // m * m


def _rgcn_kernel(y_ref, a_ref, b_ref, out_ref):
    # grid = (row_tiles, R, src_tiles); (r, k) are the reduction axes (innermost).
    r = pl.program_id(1)
    k = pl.program_id(2)

    @pl.when((r == 0) & (k == 0))
    def _():
        # Initialize the resident output tile with the bias -> no epilogue add.
        out_ref[...] = jnp.broadcast_to(b_ref[...], out_ref.shape)

    # Dense scatter-sum contribution of relation r, source tile k, for this tile
    # of destination nodes:  out[tile_i] += A_r[tile_i, tile_k] @ (X @ W_r)[tile_k]
    out_ref[...] += jnp.dot(a_ref[...], y_ref[...],
                            preferred_element_type=jnp.float32)


def rel_graph_conv(x, weight, h_bias, src, dst, etypes, norm=None):
    """x: (N, D) f32, weight: (R, D, D), h_bias: (D,),
    src/dst/etypes: (E,) int32, norm: optional (E, 1) f32."""
    N, D = x.shape
    R = weight.shape[0]

    # ---- tiling / padding ----
    TM = min(256, _round_up(N, 8))        # destination-node rows per grid step
    Np_dst = _round_up(N, TM)             # padded destination-node count
    TN = min(512, _round_up(N, 128))      # source-node (contraction) tile, lane-dense
    Np_src = _round_up(N, TN)             # padded source-node count
    Dp = _round_up(D, 128)                # padded feature dim (lane-dense stores)
    row_tiles = Np_dst // TM
    src_tiles = Np_src // TN

    # ---- glue: dense per-relation adjacency A[r, dst, src] = sum of edge norms ----
    # TODO(synk): for large sparse graphs replace dense A (O(R*N^2)) with a
    # scalar-prefetch edge-gather / CSR formulation.
    edge_vals = (jnp.ones((src.shape[0],), jnp.float32)
                 if norm is None else norm[:, 0].astype(jnp.float32))
    A = jnp.zeros((R, Np_dst, Np_src), jnp.float32).at[etypes, dst, src].add(edge_vals)
    A = A.astype(jnp.bfloat16)            # dominant operand: halve DMA / VMEM bytes

    # ---- glue: hoist the small (K = D) matmul out of the per-relation loop ----
    #   Y[r] = X @ W_r with rows padded to Np_src and feature dim padded to Dp.
    xp = jnp.zeros((Np_src, D), jnp.float32).at[:N, :].set(x.astype(jnp.float32))
    wp = jnp.zeros((R, D, Dp), jnp.float32).at[:, :, :D].set(weight.astype(jnp.float32))
    Y = jnp.einsum("nd,rde->rne", xp, wp).astype(jnp.bfloat16)

    bias2d = jnp.zeros((1, Dp), jnp.float32).at[0, :D].set(h_bias.astype(jnp.float32))

    # VMEM budget: double-buffered A + Y tiles, resident f32 out tile, bias.
    vmem_bytes = (2 * (TM * TN * 2)       # A tile (bf16), double-buffered
                  + 2 * (TN * Dp * 2)     # Y tile (bf16), double-buffered
                  + 2 * (TM * Dp * 4)     # out tile (f32)
                  + 2 * (Dp * 4))         # bias
    vmem_limit = int(min(max(2 * vmem_bytes + (8 << 20), 32 << 20), 64 << 20))

    cost = pl.CostEstimate(
        flops=2 * R * Np_dst * Np_src * Dp,
        transcendentals=0,
        bytes_accessed=(R * Np_dst * Np_src * 2            # A (bf16)
                        + row_tiles * R * Np_src * Dp * 2  # Y re-read per row tile (bf16)
                        + Np_dst * Dp * 4),                # output (f32)
    )

    out_p = pl.pallas_call(
        _rgcn_kernel,
        out_shape=jax.ShapeDtypeStruct((Np_dst, Dp), jnp.float32),
        grid_spec=pltpu.PrefetchScalarGridSpec(
            num_scalar_prefetch=0,
            grid=(row_tiles, R, src_tiles),
            in_specs=[
                pl.BlockSpec((pl.Squeezed(), TN, Dp), lambda i, r, k: (r, k, 0)),  # Y_r tile
                pl.BlockSpec((pl.Squeezed(), TM, TN), lambda i, r, k: (r, i, k)),  # A_r tile
                pl.BlockSpec((1, Dp), lambda i, r, k: (0, 0)),                     # bias
            ],
            out_specs=pl.BlockSpec((TM, Dp), lambda i, r, k: (i, 0)),              # resident acc
        ),
        compiler_params=pltpu.CompilerParams(
            dimension_semantics=("parallel", "arbitrary", "arbitrary"),
            vmem_limit_bytes=vmem_limit,
        ),
        cost_estimate=cost,
    )(Y, A, bias2d)

    return out_p[:N, :D]


def rel_graph_conv_ref(x, weight, h_bias, src, dst, etypes, norm=None):
    """Pure-JAX edge-list reference (mirrors the PyTorch message/aggregate path), f32."""
    msg = jnp.einsum("eh,ehd->ed", x[src], weight[etypes])
    if norm is not None:
        msg = msg * norm
    out = jnp.zeros((x.shape[0], weight.shape[-1]), jnp.float32).at[dst].add(msg)
    return out + h_bias[None, :]


def rel_graph_conv_quant_ref(x, weight, h_bias, src, dst, etypes, norm=None):
    """Pure-JAX reference with the same bf16 rounding of A and Y as the kernel."""
    N, _ = x.shape
    R = weight.shape[0]
    edge_vals = (jnp.ones((src.shape[0],), jnp.float32)
                 if norm is None else norm[:, 0].astype(jnp.float32))
    A = jnp.zeros((R, N, N), jnp.float32).at[etypes, dst, src].add(edge_vals)
    A = A.astype(jnp.bfloat16).astype(jnp.float32)
    Y = jnp.einsum("nd,rde->rne", x, weight).astype(jnp.bfloat16).astype(jnp.float32)
    out = jnp.einsum("rij,rjd->id", A, Y)
    return out + h_bias[None, :]


if __name__ == "__main__":
    key = jax.random.PRNGKey(0)

    # Small shapes consistent with the module: in_feat = out_feat = rdim = 32.
    N = 16        # nodes
    D = 32        # in_feat == out_feat == rdim
    R = 4         # num_rels
    E = 64        # edges

    k_w, k_x, k_src, k_dst, k_et, k_norm = jax.random.split(key, 6)

    # Deterministic parameter init (simple regularizer: weight (R, rdim, rdim)).
    gain = float(np.sqrt(2.0))                       # calculate_gain('relu')
    bound = gain * np.sqrt(6.0 / (D + D))            # xavier_uniform bound
    weight = jax.random.uniform(k_w, (R, D, D), jnp.float32, -bound, bound)
    h_bias = jnp.zeros((D,), jnp.float32)            # nn.init.zeros_

    # Inputs: node features, random edge list, edge types, edge norms.
    x = jax.random.normal(k_x, (N, D), jnp.float32)
    src = jax.random.randint(k_src, (E,), 0, N, jnp.int32)
    dst = jax.random.randint(k_dst, (E,), 0, N, jnp.int32)
    etypes = jax.random.randint(k_et, (E,), 0, R, jnp.int32)
    norm = jax.random.uniform(k_norm, (E, 1), jnp.float32, 0.1, 1.0)

    out = jax.block_until_ready(rel_graph_conv(x, weight, h_bias, src, dst, etypes, norm))

    # Exactness vs. a reference applying the same bf16 input rounding (tight tol).
    ref_q = rel_graph_conv_quant_ref(x, weight, h_bias, src, dst, etypes, norm)
    np.testing.assert_allclose(np.asarray(out), np.asarray(ref_q), rtol=1e-4, atol=1e-4)

    # End-to-end vs. the full-f32 edge-list reference (loose tol for bf16 inputs).
    ref = rel_graph_conv_ref(x, weight, h_bias, src, dst, etypes, norm)
    np.testing.assert_allclose(np.asarray(out), np.asarray(ref), rtol=2e-2, atol=2e-2)

    # TODO(synk): dropout / activation / self_loop / 'basis' & 'bdd' regularizers are
    # disabled in this default config; only the 'simple' sum-aggregation path is kernelized.
    print("KERNEL_OK")
</pallas_src>

<mosaic_0001>
module attributes {stable_mosaic.version = 11 : i64} {
  func.func @_rgcn_kernel(%arg0: i32, %arg1: i32, %arg2: i32, %arg3: memref<1x128x128xbf16, #tpu.memory_space<vmem>>, %arg4: memref<1x16x128xbf16, #tpu.memory_space<vmem>>, %arg5: memref<1x128xf32, #tpu.memory_space<vmem>>, %arg6: memref<16x128xf32, #tpu.memory_space<vmem>>) attributes {dimension_semantics = [#tpu.dimension_semantics<parallel>, #tpu.dimension_semantics<arbitrary>, #tpu.dimension_semantics<arbitrary>], iteration_bounds = array<i64: 1, 4, 1>, scalar_prefetch = 0 : i64, scratch_operands = 0 : i64, tpu.core_type = #tpu.core_type<tc>, window_params = [{transform_indices = @transform_0, window_bounds = array<i64: 1, 128, 128>}, {transform_indices = @transform_1, window_bounds = array<i64: 1, 16, 128>}, {pipeline_mode = #tpu.pipeline_mode<synchronous>, transform_indices = @transform_2, window_bounds = array<i64: 1, 128>}, {transform_indices = @transform_3, window_bounds = array<i64: 16, 128>}]} {
    %c0_i32 = arith.constant 0 : i32
    %0 = arith.cmpi eq, %arg1, %c0_i32 : i32
    %c0_i32_0 = arith.constant 0 : i32
    %1 = arith.cmpi eq, %arg2, %c0_i32_0 : i32
    %2 = arith.andi %0, %1 : i1
    %3 = arith.extui %2 : i1 to i32
    %c0_i32_1 = arith.constant 0 : i32
    %4 = arith.cmpi ne, %3, %c0_i32_1 : i32
    scf.if %4 {
      %c0_11 = arith.constant 0 : index
      %c0_12 = arith.constant 0 : index
      %13 = vector.load %arg5[%c0_11, %c0_12] : memref<1x128xf32, #tpu.memory_space<vmem>>, vector<1x128xf32>
      %14 = vector.shape_cast %13 : vector<1x128xf32> to vector<1x128xf32>
      %15 = vector.broadcast %14 : vector<1x128xf32> to vector<16x128xf32>
      %c0_13 = arith.constant 0 : index
      %c0_14 = arith.constant 0 : index
      %16 = vector.load %arg6[%c0_13, %c0_14] : memref<16x128xf32, #tpu.memory_space<vmem>>, vector<16x128xf32>
      tpu.vector_store %arg6[%c0_13, %c0_14], %15 {strides = array<i32>} : memref<16x128xf32, #tpu.memory_space<vmem>>, vector<16x128xf32>,
    } else {
    }
    %c0 = arith.constant 0 : index
    %c0_2 = arith.constant 0 : index
    %5 = vector.load %arg6[%c0, %c0_2] : memref<16x128xf32, #tpu.memory_space<vmem>>, vector<16x128xf32>
    %c0_3 = arith.constant 0 : index
    %c0_4 = arith.constant 0 : index
    %c0_5 = arith.constant 0 : index
    %6 = vector.load %arg4[%c0_3, %c0_4, %c0_5] : memref<1x16x128xbf16, #tpu.memory_space<vmem>>, vector<1x16x128xbf16>
    %7 = vector.shape_cast %6 : vector<1x16x128xbf16> to vector<16x128xbf16>
    %c0_6 = arith.constant 0 : index
    %c0_7 = arith.constant 0 : index
    %c0_8 = arith.constant 0 : index
    %8 = vector.load %arg3[%c0_6, %c0_7, %c0_8] : memref<1x128x128xbf16, #tpu.memory_space<vmem>>, vector<1x128x128xbf16>
    %9 = vector.shape_cast %8 : vector<1x128x128xbf16> to vector<128x128xbf16>
    %cst = arith.constant dense<0.000000e+00> : vector<16x128xf32>
    %10 = tpu.matmul %7, %9, %cst {dimension_numbers = #tpu.dot_dimension_numbers<[1], [0], [0], [1], [0, 0, 1, 1], [], []>} : vector<16x128xbf16>, vector<128x128xbf16>, vector<16x128xf32> -> vector<16x128xf32>
    %11 = arith.addf %5, %10 : vector<16x128xf32>
    %c0_9 = arith.constant 0 : index
    %c0_10 = arith.constant 0 : index
    %12 = vector.load %arg6[%c0_9, %c0_10] : memref<16x128xf32, #tpu.memory_space<vmem>>, vector<16x128xf32>
    tpu.vector_store %arg6[%c0_9, %c0_10], %11 {strides = array<i32>} : memref<16x128xf32, #tpu.memory_space<vmem>>, vector<16x128xf32>,
    return
  }
  func.func @transform_0(%arg0: i32, %arg1: i32, %arg2: i32) -> (i32, i32, i32) {
    %c0_i32 = arith.constant 0 : i32
    %c0_i32_0 = arith.constant 0 : i32
    return %arg1, %arg2, %c0_i32 : i32, i32, i32
  }
  func.func @transform_1(%arg0: i32, %arg1: i32, %arg2: i32) -> (i32, i32, i32) {
    %c0_i32 = arith.constant 0 : i32
    return %arg1, %arg0, %arg2 : i32, i32, i32
  }
  func.func @transform_2(%arg0: i32, %arg1: i32, %arg2: i32) -> (i32, i32) {
    %c0_i32 = arith.constant 0 : i32
    %c0_i32_0 = arith.constant 0 : i32
    %c0_i32_1 = arith.constant 0 : i32
    return %c0_i32, %c0_i32_0 : i32, i32
  }
  func.func @transform_3(%arg0: i32, %arg1: i32, %arg2: i32) -> (i32, i32) {
    %c0_i32 = arith.constant 0 : i32
    %c0_i32_0 = arith.constant 0 : i32
    return %arg0, %c0_i32 : i32, i32
  }
}

</mosaic_0001>

<llo_original>
// kernel: tpu_custom_call.1
$region0: #{tpu_custom_call.1}
  #allocation0 [shape = 'u32[]', space=smem, size = 0x4, offset = 0x4, fixed_abs, tag = 'smem constant byte address 0x4 - core index']
  #allocation1 [shape = 'u32[72,128]{1,0:T(1,128)}', space=vmem, size = 0x9000, scoped, tag = 'internal scratch']
  %s0 = inlined_call_operand.hbm [shape: bf16[4,128,128], index: 0, kind: input, shape index: {}]
  %s1 = inlined_call_operand.hbm [shape: bf16[4,16,128], index: 1, kind: input, shape index: {}]
  %s2 = inlined_call_operand.vmem [shape: f32[1,128], index: 2, kind: input, shape index: {}]
  %s3 = inlined_call_operand.hbm [shape: f32[16,128], index: 3, kind: output, shape index: {}]
  %s4 = sld [smem:[#allocation0]]
  $region57: #{tpu_custom_call.1} parent=0
    _
  %s6 = ssub.s32 1, %s4
  %s7 = scalar_select 0, %s6, %s4
  $region1: #{tpu_custom_call.1} parent=0
    #allocation2 [shape = 'u8[65536]{0}', space=vmem, size = 0x10000, scoped, tag = 'input window, operand 0']
    #allocation3 [shape = 's32[2]{0}', space=sflag, size = 0x8, scoped, tag = 'scoped memory for tpu_custom_call.1']
    #allocation4 [shape = 's32[2]{0}', space=sflag, size = 0x8, scoped, tag = 'scoped memory for tpu_custom_call.1']
    #allocation5 [shape = 'u8[8192]{0}', space=vmem, size = 0x2000, scoped, tag = 'input window, operand 1']
    #allocation6 [shape = 's32[2]{0}', space=sflag, size = 0x8, scoped, tag = 'scoped memory for tpu_custom_call.1']
    #allocation7 [shape = 'u8[8192]{0}', space=vmem, size = 0x2000, scoped, tag = 'output window, operand 0, single buffered']
    %8 = vsyncpa [#allocation3], 0
    %s9 = scalar_lea.sflag [#allocation3], 1
    %10 = vsyncpa %s9, 0
    %11 = vsyncpa [#allocation6], 0
    %s12 = scalar_lea.sflag [#allocation6], 1
    %13 = vsyncpa %s12, 0
    %14 = vsyncpa [#allocation4], 0
    loop: start=0, step=1, limit=6
    $region2: #{tpu_custom_call.1} parent=1 // loop_pre_header
      _
    $region3: #{tpu_custom_call.1} parent=1 // loop_header
      %s16 = sphi 0, %s20
      %p17 = scmp.ge.s32.totalorder %s16, 6
      %s23 = sphi 0, %s42
      %s24 = sphi 0, %s38
      %s25 = sphi 0, %s34
      %s26 = sphi 0, %s23
      %s27 = sphi 0, %s24
      %s28 = sphi 0, %s25
      %s29 = sphi 0, %s26
      %s30 = sphi 0, %s27
      %s31 = sphi 0, %s28
      %s47 = sphi 0, %s49
      %s50 = sphi 0, %s47
      %s51 = sphi 0, %s50
      %s67 = sphi 0, %s51
      %s77 = sphi 0, %s79
      %s80 = sphi 0, %s77
      %s81 = sphi 0, %s80
      %s97 = sphi 0, %s81
      %s101 = sphi 0, %s101
      %s103 = sphi 0, %s101
      %s104 = sphi 0, %s103
      %s118 = sphi 0, %s104
      %s124 = sphi 0, %s126
      %s127 = sphi 0, %s124
      %s128 = sphi 0, %s127
      %s144 = sphi 0, %s128
    $region4: #{tpu_custom_call.1} parent=1 // loop_header_branch
      %19 = sbr.rel (%p17) target = $region8
    $region5: #{tpu_custom_call.1} parent=1 // loop_body
      %s21 = ssub.s32 %s16, 1
      %s22 = ssub.s32 %s16, 2
      %s32 = sadd.s32 1, %s25
      %p33 = scmp.ge.s32.totalorder %s32, 1
      %s34 = scalar_select %p33, 0, %s32
      %s35 = sadd.s32 1, %s24
      %s36 = scalar_select %p33, %s35, %s24
      %p37 = scmp.ge.s32.totalorder %s36, 4
      %s38 = scalar_select %p37, 0, %s36
      %s39 = sadd.s32 1, %s23
      %s40 = scalar_select %p37, %s39, %s23
      %p41 = scmp.ge.s32.totalorder %s40, 1
      %s42 = scalar_select %p41, 0, %s40
      %s43 = ssub.s32 %s24, %s38
      %s44 = ssub.s32 %s25, %s34
      %s45 = sor.u32 %s43, %s44
      %p46 = scmp.eq.s32.totalorder %s45, 0
      %s48 = sadd.s32 %s47, 1
      %s49 = scalar_select %p46, %s47, %s48
      %p52 = pneg %p46
      %p53 = scmp.eq.s32.totalorder %s16, 3
      %p54 = por %p52, %p53
      %p55 = scmp.ne.s32.totalorder %s47, %s50
      %p56 = scmp.eq.s32.totalorder %s16, 0
      %p57 = por %p55, %p56
      %p58 = scmp.ne.s32.totalorder %s47, %s50
      %p59 = scmp.eq.s32.totalorder %s21, 3
      %p60 = por %p58, %p59
      %p61 = scmp.ne.s32.totalorder %s50, %s51
      %p62 = scmp.eq.s32.totalorder %s21, 0
      %p63 = por %p61, %p62
      %p64 = scmp.ne.s32.totalorder %s50, %s51
      %p65 = scmp.eq.s32.totalorder %s22, 3
      %p66 = por %p64, %p65
      %p68 = scmp.ne.s32.totalorder %s51, %s67
      %p69 = scmp.eq.s32.totalorder %s22, 0
      %p70 = por %p68, %p69
      %s71 = ssub.s32 %s24, %s38
      %s72 = ssub.s32 %s23, %s42
      %s73 = sor.u32 %s71, %s72
      %s74 = ssub.s32 %s25, %s34
      %s75 = sor.u32 %s73, %s74
      %p76 = scmp.eq.s32.totalorder %s75, 0
      %s78 = sadd.s32 %s77, 1
      %s79 = scalar_select %p76, %s77, %s78
      %p82 = pneg %p76
      %p83 = scmp.eq.s32.totalorder %s16, 3
      %p84 = por %p82, %p83
      %p85 = scmp.ne.s32.totalorder %s77, %s80
      %p86 = scmp.eq.s32.totalorder %s16, 0
      %p87 = por %p85, %p86
      %p88 = scmp.ne.s32.totalorder %s77, %s80
      %p89 = scmp.eq.s32.totalorder %s21, 3
      %p90 = por %p88, %p89
      %p91 = scmp.ne.s32.totalorder %s80, %s81
      %p92 = scmp.eq.s32.totalorder %s21, 0
      %p93 = por %p91, %p92
      %p94 = scmp.ne.s32.totalorder %s80, %s81
      %p95 = scmp.eq.s32.totalorder %s22, 3
      %p96 = por %p94, %p95
      %p98 = scmp.ne.s32.totalorder %s81, %s97
      %p99 = scmp.eq.s32.totalorder %s22, 0
      %p100 = por %p98, %p99
      %s102 = sadd.s32 %s101, 1
      %p105 = scmp.eq.s32.totalorder %s16, 3
      %p106 = scmp.ne.s32.totalorder %s101, %s103
      %p107 = scmp.eq.s32.totalorder %s16, 0
      %p108 = por %p106, %p107
      %p109 = scmp.ne.s32.totalorder %s101, %s103
      %p110 = scmp.eq.s32.totalorder %s21, 3
      %p111 = por %p109, %p110
      %p112 = scmp.ne.s32.totalorder %s103, %s104
      %p113 = scmp.eq.s32.totalorder %s21, 0
      %p114 = por %p112, %p113
      %p115 = scmp.ne.s32.totalorder %s103, %s104
      %p116 = scmp.eq.s32.totalorder %s22, 3
      %p117 = por %p115, %p116
      %p119 = scmp.ne.s32.totalorder %s104, %s118
      %p120 = scmp.eq.s32.totalorder %s22, 0
      %p121 = por %p119, %p120
      %s122 = ssub.s32 %s23, %s42
      %p123 = scmp.eq.s32.totalorder %s122, 0
      %s125 = sadd.s32 %s124, 1
      %s126 = scalar_select %p123, %s124, %s125
      %p129 = pneg %p123
      %p130 = scmp.eq.s32.totalorder %s16, 3
      %p131 = por %p129, %p130
      %p132 = scmp.ne.s32.totalorder %s124, %s127
      %p133 = scmp.eq.s32.totalorder %s16, 0
      %p134 = por %p132, %p133
      %p135 = scmp.ne.s32.totalorder %s124, %s127
      %p136 = scmp.eq.s32.totalorder %s21, 3
      %p137 = por %p135, %p136
      %p138 = scmp.ne.s32.totalorder %s127, %s128
      %p139 = scmp.eq.s32.totalorder %s21, 0
      %p140 = por %p138, %p139
      %p141 = scmp.ne.s32.totalorder %s127, %s128
      %p142 = scmp.eq.s32.totalorder %s22, 3
      %p143 = por %p141, %p142
      %p145 = scmp.ne.s32.totalorder %s128, %s144
      %p146 = scmp.eq.s32.totalorder %s22, 0
      %p147 = por %p145, %p146
      %p148 = scmp.le.s32.totalorder 1, %s16
      %p149 = scmp.lt.s32.totalorder %s16, 5
      %p150 = pnand %p148, %p149
      %p151 = pneg %p150
      // Predicated region
      $region9: #{tpu_custom_call.1} parent=5 // pred_check
        _
      $region10: #{tpu_custom_call.1} parent=5 // pred_check_branch
        %153 = sbr.rel (%p150) target = $region12
      $region11: #{tpu_custom_call.1} parent=5 // pred_region
        %s154 = ssub.s32 %s16, 1
        // Predicated region
        $region13: #{tpu_custom_call.1} parent=11 // pred_check
          %p155 = pneg %p114
        $region14: #{tpu_custom_call.1} parent=11 // pred_check_branch
          %157 = sbr.rel (%p155) target = $region16
        $region15: #{tpu_custom_call.1} parent=11 // pred_region
          _
        $region16: #{tpu_custom_call.1} parent=11 // pred_fallthru
          _
      $region12: #{tpu_custom_call.1} parent=5 // pred_fallthru
        _
      %p158 = scmp.lt.s32.totalorder %s16, 4
      // Predicated region
      $region17: #{tpu_custom_call.1} parent=5 // pred_check
        %p159 = pneg %p158
      $region18: #{tpu_custom_call.1} parent=5 // pred_check_branch
        %161 = sbr.rel (%p159) target = $region20
      $region19: #{tpu_custom_call.1} parent=5 // pred_region
        // Predicated region
        $region21: #{tpu_custom_call.1} parent=19 // pred_check
          %p162 = pneg %p57
        $region22: #{tpu_custom_call.1} parent=19 // pred_check_branch
          %164 = sbr.rel (%p162) target = $region24
        $region23: #{tpu_custom_call.1} parent=19 // pred_region
          %s165 = sand.u32 %s47, 1
          %s166 = scalar_lea.sflag [#allocation3], %s165
          %s167 = sand.u32 %s47, 1
          %s168 = smul.addr %s167, 64
          %s169 = scalar_lea.vmem [#allocation2], %s168
          %s170 = smul.u32 16, %s25
          %172 = vsyncadd %s166, 0
          %s173 = smul.addr %s24, 16
          %s174 = sadd.s32 %s170, %s173
          %s175 = smul.addr %s174, 4
          %s176 = scalar_lea.hbm %s0, %s175
          %s177 = sshll.u32 %s176, 4
          %s178 = int_to_ptr.hbm [resolvable:$true] %s177
          %s179 = sshll.u32 %s169, 4
          %s180 = int_to_ptr.vmem [resolvable:$true] %s179
          %185 = dma.hbm_to_vmem [thread:$0]  %s178, 1024, %s180, %s166, 64, 64, 4
        $region24: #{tpu_custom_call.1} parent=19 // pred_fallthru
          _
        // Predicated region
        $region25: #{tpu_custom_call.1} parent=19 // pred_check
          %p186 = pneg %p87
        $region26: #{tpu_custom_call.1} parent=19 // pred_check_branch
          %188 = sbr.rel (%p186) target = $region28
        $region27: #{tpu_custom_call.1} parent=19 // pred_region
          %s189 = sand.u32 %s77, 1
          %s190 = scalar_lea.sflag [#allocation6], %s189
          %s191 = sand.u32 %s77, 1
          %s192 = smul.addr %s191, 8
          %s193 = scalar_lea.vmem [#allocation5], %s192
          %s194 = smul.u32 2, %s23
          %196 = vsyncadd %s190, 0
          %s197 = sadd.s32 %s25, %s194
          %s198 = smul.addr %s24, 2
          %s199 = sadd.s32 %s197, %s198
          %s200 = smul.addr %s199, 4
          %s201 = scalar_lea.hbm %s1, %s200
          %s202 = sshll.u32 %s201, 4
          %s203 = int_to_ptr.hbm [resolvable:$true] %s202
          %s204 = sshll.u32 %s193, 4
          %s205 = int_to_ptr.vmem [resolvable:$true] %s204
          %210 = dma.hbm_to_vmem [thread:$0]  %s203, 128, %s205, %s190, 64, 64, 4
        $region28: #{tpu_custom_call.1} parent=19 // pred_fallthru
          _
      $region20: #{tpu_custom_call.1} parent=5 // pred_fallthru
        _
      %p211 = scmp.le.s32.totalorder 1, %s16
      %p212 = scmp.lt.s32.totalorder %s16, 5
      %p213 = pnand %p211, %p212
      %p214 = pneg %p213
      // Predicated region
      $region29: #{tpu_custom_call.1} parent=5 // pred_check
        _
      $region30: #{tpu_custom_call.1} parent=5 // pred_check_branch
        %216 = sbr.rel (%p213) target = $region32
      $region31: #{tpu_custom_call.1} parent=5 // pred_region
        %s217 = ssub.s32 %s16, 1
        %s218 = sand.u32 %s50, 1
        %s219 = scalar_lea.sflag [#allocation3], %s218
        %s220 = sand.u32 %s50, 1
        %s221 = smul.addr %s220, 64
        %s222 = scalar_lea.vmem [#allocation2], %s221
        // Predicated region
        $region33: #{tpu_custom_call.1} parent=31 // pred_check
          %p223 = pneg %p63
        $region34: #{tpu_custom_call.1} parent=31 // pred_check_branch
          %225 = sbr.rel (%p223) target = $region36
        $region35: #{tpu_custom_call.1} parent=31 // pred_region
          %227 = dma.done %s219, 1024
        $region36: #{tpu_custom_call.1} parent=31 // pred_fallthru
          _
        %s228 = sand.u32 %s80, 1
        %s229 = scalar_lea.sflag [#allocation6], %s228
        %s230 = sand.u32 %s80, 1
        %s231 = smul.addr %s230, 8
        %s232 = scalar_lea.vmem [#allocation5], %s231
        // Predicated region
        $region37: #{tpu_custom_call.1} parent=31 // pred_check
          %p233 = pneg %p93
        $region38: #{tpu_custom_call.1} parent=31 // pred_check_branch
          %235 = sbr.rel (%p233) target = $region40
        $region39: #{tpu_custom_call.1} parent=31 // pred_region
          %237 = dma.done %s229, 128
        $region40: #{tpu_custom_call.1} parent=31 // pred_fallthru
          _
        %s238 = sand.u32 %s50, 1
        %s239 = scalar_lea.sflag [#allocation3], %s238
        %s240 = sand.u32 %s50, 1
        %s241 = smul.addr %s240, 64
        %s242 = scalar_lea.vmem [#allocation2], %s241
        %p243 = pneg %p63
        %p244 = pneg %p60
        %s245 = sand.u32 %s80, 1
        %s246 = scalar_lea.sflag [#allocation6], %s245
        %s247 = sand.u32 %s80, 1
        %s248 = smul.addr %s247, 8
        %s249 = scalar_lea.vmem [#allocation5], %s248
        %p250 = pneg %p93
        %p251 = pneg %p90
        %p252 = pneg %p114
        %p253 = pneg %p111
        %p254 = pneg %p140
        %p255 = pneg %p137
        %s256 = smul.u32 16, %s28
        %s257 = smul.u32 2, %s26
        %s258 = smul.u32 2, %s26
        %p259 = scmp.eq.s32.totalorder %s27, 0
        %p260 = scmp.eq.s32.totalorder %s28, 0
        %p261 = pnand %p259, %p260
        %p262 = pneg %p261
        // Predicated region
        $region41: #{tpu_custom_call.1} parent=31 // pred_check
          _
        $region42: #{tpu_custom_call.1} parent=31 // pred_check_branch
          %264 = sbr.rel (%p261) target = $region44
        $region43: #{tpu_custom_call.1} parent=31 // pred_region
          %v265 = vld [vmem:[%s2] sm:$0x1]
          %v267 = vperm.slane %v265, 0
          %269 = vst [vmem:[#allocation7] sm:$0xff] %v267
          %270 = vst [vmem:[#allocation7 + $0x8] sm:$0xff] %v267
        $region44: #{tpu_custom_call.1} parent=31 // pred_fallthru
          _
        %v271 = vld [vmem:[#allocation7] sm:$0xff]
        %v272 = vld [vmem:[#allocation7 + $0x8] sm:$0xff]
        %v273 = vld [vmem:[%s232] sm:$0xf]
        %v274 = vld [vmem:[%s232 + $0x4] sm:$0xf]
        %v275 = vld [vmem:[%s222] sm:$0xf]
        %v276 = vld [vmem:[%s222 + $0x4] sm:$0xf]
        %v277 = vld [vmem:[%s222 + $0x8] sm:$0xf]
        %v278 = vld [vmem:[%s222 + $0xc] sm:$0xf]
        %v279 = vld [vmem:[%s222 + $0x10] sm:$0xf]
        %v280 = vld [vmem:[%s222 + $0x14] sm:$0xf]
        %v281 = vld [vmem:[%s222 + $0x18] sm:$0xf]
        %v282 = vld [vmem:[%s222 + $0x1c] sm:$0xf]
        %v283 = vld [vmem:[%s222 + $0x20] sm:$0xf]
        %v284 = vld [vmem:[%s222 + $0x24] sm:$0xf]
        %v285 = vld [vmem:[%s222 + $0x28] sm:$0xf]
        %v286 = vld [vmem:[%s222 + $0x2c] sm:$0xf]
        %v287 = vld [vmem:[%s222 + $0x30] sm:$0xf]
        %v288 = vld [vmem:[%s222 + $0x34] sm:$0xf]
        %v289 = vld [vmem:[%s222 + $0x38] sm:$0xf]
        %v290 = vld [vmem:[%s222 + $0x3c] sm:$0xf]
        %v293 = vunpack.c.l.b16 %v273
        %v294 = vunpack.c.l.b16 %v274
        %v295 = vpack.c.b16 %v294, %v293
        %v313 = vunpack.c.l.b16 %v275
        %v314 = vunpack.c.l.b16 %v276
        %v315 = vunpack.c.l.b16 %v277
        %v316 = vunpack.c.l.b16 %v278
        %v317 = vunpack.c.l.b16 %v279
        %v318 = vunpack.c.l.b16 %v280
        %v319 = vunpack.c.l.b16 %v281
        %v320 = vunpack.c.l.b16 %v282
        %v321 = vunpack.c.l.b16 %v283
        %v322 = vunpack.c.l.b16 %v284
        %v323 = vunpack.c.l.b16 %v285
        %v324 = vunpack.c.l.b16 %v286
        %v325 = vunpack.c.l.b16 %v287
        %v326 = vunpack.c.l.b16 %v288
        %v327 = vunpack.c.l.b16 %v289
        %v328 = vunpack.c.l.b16 %v290
        %v329 = vpack.c.b16 %v314, %v313
        %v330 = vpack.c.b16 %v316, %v315
        %v331 = vpack.c.b16 %v318, %v317
        %v332 = vpack.c.b16 %v320, %v319
        %v333 = vpack.c.b16 %v322, %v321
        %v334 = vpack.c.b16 %v324, %v323
        %v335 = vpack.c.b16 %v326, %v325
        %v336 = vpack.c.b16 %v328, %v327
        %345 = vmatpush.bf16.msra.mxu0 %v336
        %346 = vmatpush.bf16.msra.mxu0 %v335
        %347 = vmatpush.bf16.msra.mxu0 %v334
        %348 = vmatpush.bf16.msra.mxu0 %v333
        %349 = vmatpush.bf16.msra.mxu0 %v332
        %350 = vmatpush.bf16.msra.mxu0 %v331
        %351 = vmatpush.bf16.msra.mxu0 %v330
        %352 = vmatpush.bf16.msra.mxu0 %v329
        %353 = vmatmul.bf16.gmra.mxu0 %v295
        %v354 = vpop.f32.mrf.mxu0
        %v355 = vadd.f32 0.0, %v354
        %v356 = vpop.f32.mrf.mxu0
        %v357 = vadd.f32 0.0, %v356
        %358 = vdwg.mxu0
        %v359 = vadd.f32 %v271, %v355
        %v360 = vadd.f32 %v272, %v357
        %361 = vst [vmem:[#allocation7] sm:$0xff] %v359
        %362 = vst [vmem:[#allocation7 + $0x8] sm:$0xff] %v360
        // Predicated region
        $region45: #{tpu_custom_call.1} parent=31 // pred_check
          %p363 = pneg %p137
        $region46: #{tpu_custom_call.1} parent=31 // pred_check_branch
          %365 = sbr.rel (%p363) target = $region48
        $region47: #{tpu_custom_call.1} parent=31 // pred_region
          %s366 = smul.u32 2, %s26
          %368 = vsyncadd [#allocation4], 0
          %s369 = smul.addr %s366, 8
          %s370 = scalar_lea.hbm %s3, %s369
          %s371 = sshll.u32 [#allocation7], 4
          %s372 = int_to_ptr.vmem [resolvable:$true] %s371
          %s373 = sshll.u32 %s370, 4
          %s374 = int_to_ptr.hbm [resolvable:$true] %s373
          %379 = dma.vmem_to_hbm [thread:$0]  %s372, 256, %s374, [#allocation4], 128, 128, 8
        $region48: #{tpu_custom_call.1} parent=31 // pred_fallthru
          _
        // Predicated region
        $region49: #{tpu_custom_call.1} parent=31 // pred_check
          %p380 = pneg %p137
        $region50: #{tpu_custom_call.1} parent=31 // pred_check_branch
          %382 = sbr.rel (%p380) target = $region52
        $region51: #{tpu_custom_call.1} parent=31 // pred_region
          %384 = dma.done [#allocation4], 256
        $region52: #{tpu_custom_call.1} parent=31 // pred_fallthru
          _
      $region32: #{tpu_custom_call.1} parent=5 // pred_fallthru
        _
      %p385 = scmp.le.s32.totalorder 2, %s16
      // Predicated region
      $region53: #{tpu_custom_call.1} parent=5 // pred_check
        %p386 = pneg %p385
      $region54: #{tpu_custom_call.1} parent=5 // pred_check_branch
        %388 = sbr.rel (%p386) target = $region56
      $region55: #{tpu_custom_call.1} parent=5 // pred_region
        %s389 = ssub.s32 %s16, 2
      $region56: #{tpu_custom_call.1} parent=5 // pred_fallthru
        _
    $region6: #{tpu_custom_call.1} parent=1 // loop_footer
      %s20 = sadd.s32 1, %s16
    $region7: #{tpu_custom_call.1} parent=1 // loop_footer_branch
      %15 = sbr.rel target = $region3
    $region8: #{tpu_custom_call.1} parent=1 // loop_exit
      _
    %390 = vsyncpa [#allocation3], 1
    %s391 = scalar_lea.sflag [#allocation3], 1
    %392 = vsyncpa %s391, 1
    %393 = vsyncpa [#allocation6], 1
    %s394 = scalar_lea.sflag [#allocation6], 1
    %395 = vsyncpa %s394, 1
    %396 = vsyncpa [#allocation4], 1
    %s397 = scalar_lea.sflag [#allocation4], 1
    %398 = vsyncpa %s397, 1

</llo_original>
